<compile_context>
chip_gen: v5e
topology: v5e:2x2
jax: 0.10.0
libtpu: 0.0.40
codegen_flags: <defaults>
</compile_context>

<pallas_src>
from functools import partial

import jax
import jax.numpy as jnp
from jax import lax
from jax.experimental import pallas as pl
from jax.experimental.pallas import tpu as pltpu


# ----------------------------- helpers -------------------------------------

def _choose_tile(total, preferred, align):
    """Largest multiple of `align` that divides `total` and is <= preferred,
    or `total` itself when it already fits / no aligned divisor exists."""
    if total <= preferred:
        return total
    best = None
    t = align
    while t <= preferred:
        if total % t == 0:
            best = t
        t += align
    return best if best is not None else total


# ----------------------------- Pallas kernels ------------------------------

def _linear_kernel(x_ref, w_ref, b_ref, o_ref, acc_ref):
    """One (tm, tn) output tile; K is reduced over grid axis 2 into acc_ref."""
    @pl.when(pl.program_id(2) == 0)
    def _():
        acc_ref[...] = jnp.zeros_like(acc_ref)

    acc_ref[...] += jnp.dot(x_ref[...], w_ref[...],
                            preferred_element_type=jnp.float32)

    @pl.when(pl.program_id(2) == pl.num_programs(2) - 1)
    def _():
        o_ref[...] = (acc_ref[...] + b_ref[...].astype(jnp.float32)
                      ).astype(o_ref.dtype)


def pallas_linear(x2d, w, b, *, tm=256, tn=256, tk=512):
    """x2d: (M, K), w: (K, Nout), b: (Nout,) -> (M, Nout), tiled + pipelined."""
    M, K = x2d.shape
    Nout = w.shape[1]
    tm = _choose_tile(M, tm, 8)       # sublane dim of x / out
    tn = _choose_tile(Nout, tn, 128)  # lane dim of w / out  (lane-dense writeback)
    tk = _choose_tile(K, tk, 128)     # lane dim of x, sublane dim of w
    grid = (M // tm, Nout // tn, K // tk)
    return pl.pallas_call(
        _linear_kernel,
        out_shape=jax.ShapeDtypeStruct((M, Nout), x2d.dtype),
        grid_spec=pltpu.PrefetchScalarGridSpec(
            num_scalar_prefetch=0,
            grid=grid,
            in_specs=[
                pl.BlockSpec((tm, tk), lambda i, j, k: (i, k)),
                pl.BlockSpec((tk, tn), lambda i, j, k: (k, j)),
                pl.BlockSpec((1, tn), lambda i, j, k: (0, j)),
            ],
            out_specs=pl.BlockSpec((tm, tn), lambda i, j, k: (i, j)),
            scratch_shapes=[pltpu.VMEM((tm, tn), jnp.float32)],
        ),
        compiler_params=pltpu.CompilerParams(
            dimension_semantics=("parallel", "parallel", "arbitrary")),
    )(x2d, w, b.reshape(1, Nout))


def _attn_kernel(qkv_ref, o_ref, *, scale, num_heads, head_dim, dim_out):
    """qkv_ref: (1, N, 3*dim_out) fused projection for one batch element.
    o_ref:   (1, N, dim_out) — all heads written into one lane-dense block."""
    qkv = qkv_ref[0]                                   # (N, 3*dim_out), f32
    for h in range(num_heads):                         # static unroll over heads
        lo = h * head_dim
        q = qkv[:, lo:lo + head_dim]                   # (N, D)
        k = qkv[:, dim_out + lo:dim_out + lo + head_dim]
        v = qkv[:, 2 * dim_out + lo:2 * dim_out + lo + head_dim]

        # QK^T: contract last dims of both operands (no in-kernel transpose of K).
        s = lax.dot_general(q * scale, k, (((1,), (1,)), ((), ())),
                            preferred_element_type=jnp.float32)   # (N, N)
        s = s - jnp.max(s, axis=-1, keepdims=True)
        p = jnp.exp(s)
        denom = jnp.sum(p, axis=-1, keepdims=True)
        inv = pl.reciprocal(denom, approx=True)        # EUP vrcp (free slot)
        inv = inv * (2.0 - denom * inv)                # one Newton step -> ~f32 exact
        p = p * inv

        o = jnp.dot(p, v, preferred_element_type=jnp.float32) + q   # +q residual
        o_ref[0, :, lo:lo + head_dim] = o.astype(o_ref.dtype)


def pallas_attention(qkv, *, num_heads, dim_out, scale):
    """qkv: (B, N, 3*dim_out) fused projection -> (B, N, dim_out) attention output."""
    B, N, three_dim = qkv.shape
    head_dim = dim_out // num_heads
    return pl.pallas_call(
        partial(_attn_kernel, scale=scale, num_heads=num_heads,
                head_dim=head_dim, dim_out=dim_out),
        out_shape=jax.ShapeDtypeStruct((B, N, dim_out), qkv.dtype),
        grid=(B,),
        in_specs=[pl.BlockSpec((1, N, three_dim), lambda b: (b, 0, 0))],
        out_specs=pl.BlockSpec((1, N, dim_out), lambda b: (b, 0, 0)),
        compiler_params=pltpu.CompilerParams(
            dimension_semantics=("parallel",)),
    )(qkv)


# ------------------------------- Module glue -------------------------------

def init_params(key, dim, dim_out):
    """Deterministic synthetic parameters (nn.Linear shapes, stored as (in, out))."""
    k1, k2, k3, k4 = jax.random.split(key, 4)
    s_qkv = 1.0 / jnp.sqrt(dim)
    s_proj = 1.0 / jnp.sqrt(dim_out)
    return {
        "qkv_w": jax.random.uniform(k1, (dim, 3 * dim_out), jnp.float32, -s_qkv, s_qkv),
        "qkv_b": jax.random.uniform(k2, (3 * dim_out,), jnp.float32, -s_qkv, s_qkv),
        "proj_w": jax.random.uniform(k3, (dim_out, dim_out), jnp.float32, -s_proj, s_proj),
        "proj_b": jax.random.uniform(k4, (dim_out,), jnp.float32, -s_proj, s_proj),
    }


def multi_scale_attention(x, hw_shape, params, *, num_heads, dim_out,
                          downsample_ratio=1):
    """Forward pass matching MultiScaleAttention.forward with default args."""
    assert downsample_ratio == 1  # TODO(synk): pooled-q path not implemented
    B, N, C = x.shape
    head_dim = dim_out // num_heads
    scale = head_dim ** (-0.5)

    # fused qkv linear (Pallas, tiled).  Reshape only — no transposes.
    qkv = pallas_linear(x.reshape(B * N, C), params["qkv_w"], params["qkv_b"])
    qkv = qkv.reshape(B, N, 3 * dim_out)

    # attention + residual q (Pallas).  q/k/v + head split happen inside the kernel.
    o = pallas_attention(qkv, num_heads=num_heads, dim_out=dim_out, scale=scale)

    # output projection (Pallas, tiled).
    out = pallas_linear(o.reshape(B * N, dim_out), params["proj_w"], params["proj_b"])
    return out.reshape(B, N, dim_out), hw_shape


# Pure-JAX reference for validation.
def reference(x, params, *, num_heads, dim_out):
    B, N, C = x.shape
    head_dim = dim_out // num_heads
    scale = head_dim ** (-0.5)
    qkv = x @ params["qkv_w"] + params["qkv_b"]
    qkv = qkv.reshape(B, N, 3, dim_out).transpose(2, 0, 1, 3)
    q, k, v = qkv[0], qkv[1], qkv[2]
    q = q.reshape(B, N, num_heads, head_dim).transpose(0, 2, 1, 3)
    k = k.reshape(B, N, num_heads, head_dim).transpose(0, 2, 1, 3)
    v = v.reshape(B, N, num_heads, head_dim).transpose(0, 2, 1, 3)
    attn = jax.nn.softmax((q * scale) @ jnp.swapaxes(k, -2, -1), axis=-1)
    o = attn @ v + q
    o = o.transpose(0, 2, 1, 3).reshape(B, N, dim_out)
    return o @ params["proj_w"] + params["proj_b"]


if __name__ == "__main__":
    B, Hs, Ws = 2, 8, 8
    N = Hs * Ws
    dim, dim_out, num_heads = 32, 32, 4

    key = jax.random.PRNGKey(0)
    kx, kp = jax.random.split(key)
    x = jax.random.normal(kx, (B, N, dim), jnp.float32)
    params = init_params(kp, dim, dim_out)

    out, hw_new = multi_scale_attention(
        x, (Hs, Ws), params, num_heads=num_heads, dim_out=dim_out)
    out = jax.block_until_ready(out)

    ref = reference(x, params, num_heads=num_heads, dim_out=dim_out)
    assert out.shape == (B, N, dim_out)
    assert hw_new == (Hs, Ws)
    assert jnp.allclose(out, ref, atol=1e-4, rtol=1e-4)
    print("KERNEL_OK")
</pallas_src>

<mosaic_0001>
module attributes {stable_mosaic.version = 11 : i64} {
  func.func @_linear_kernel(%arg0: i32, %arg1: i32, %arg2: i32, %arg3: memref<128x32xf32, #tpu.memory_space<vmem>>, %arg4: memref<32x96xf32, #tpu.memory_space<vmem>>, %arg5: memref<1x96xf32, #tpu.memory_space<vmem>>, %arg6: memref<128x96xf32, #tpu.memory_space<vmem>>, %arg7: memref<128x96xf32, #tpu.memory_space<vmem>>) attributes {dimension_semantics = [#tpu.dimension_semantics<parallel>, #tpu.dimension_semantics<parallel>, #tpu.dimension_semantics<arbitrary>], iteration_bounds = array<i64: 1, 1, 1>, scalar_prefetch = 0 : i64, scratch_operands = 1 : i64, tpu.core_type = #tpu.core_type<tc>, window_params = [{transform_indices = @transform_0, window_bounds = array<i64: 128, 32>}, {transform_indices = @transform_1, window_bounds = array<i64: 32, 96>}, {transform_indices = @transform_2, window_bounds = array<i64: 1, 96>}, {transform_indices = @transform_3, window_bounds = array<i64: 128, 96>}]} {
    %c0_i32 = arith.constant 0 : i32
    %0 = arith.cmpi eq, %arg2, %c0_i32 : i32
    %1 = arith.extui %0 : i1 to i32
    %c0_i32_0 = arith.constant 0 : i32
    %2 = arith.cmpi ne, %1, %c0_i32_0 : i32
    scf.if %2 {
      %cst_10 = arith.constant 0.000000e+00 : f32
      %12 = vector.broadcast %cst_10 : f32 to vector<128x96xf32>
      %c0_11 = arith.constant 0 : index
      %c0_12 = arith.constant 0 : index
      %13 = vector.load %arg7[%c0_11, %c0_12] : memref<128x96xf32, #tpu.memory_space<vmem>>, vector<128x96xf32>
      tpu.vector_store %arg7[%c0_11, %c0_12], %12 {strides = array<i32>} : memref<128x96xf32, #tpu.memory_space<vmem>>, vector<128x96xf32>,
    } else {
    }
    %c0 = arith.constant 0 : index
    %c0_1 = arith.constant 0 : index
    %3 = vector.load %arg7[%c0, %c0_1] : memref<128x96xf32, #tpu.memory_space<vmem>>, vector<128x96xf32>
    %c0_2 = arith.constant 0 : index
    %c0_3 = arith.constant 0 : index
    %4 = vector.load %arg3[%c0_2, %c0_3] : memref<128x32xf32, #tpu.memory_space<vmem>>, vector<128x32xf32>
    %c0_4 = arith.constant 0 : index
    %c0_5 = arith.constant 0 : index
    %5 = vector.load %arg4[%c0_4, %c0_5] : memref<32x96xf32, #tpu.memory_space<vmem>>, vector<32x96xf32>
    %cst = arith.constant dense<0.000000e+00> : vector<128x96xf32>
    %6 = tpu.matmul %4, %5, %cst {dimension_numbers = #tpu.dot_dimension_numbers<[1], [0], [0], [1], [0, 0, 1, 1], [], []>} : vector<128x32xf32>, vector<32x96xf32>, vector<128x96xf32> -> vector<128x96xf32>
    %7 = arith.addf %3, %6 : vector<128x96xf32>
    %c0_6 = arith.constant 0 : index
    %c0_7 = arith.constant 0 : index
    %8 = vector.load %arg7[%c0_6, %c0_7] : memref<128x96xf32, #tpu.memory_space<vmem>>, vector<128x96xf32>
    tpu.vector_store %arg7[%c0_6, %c0_7], %7 {strides = array<i32>} : memref<128x96xf32, #tpu.memory_space<vmem>>, vector<128x96xf32>,
    %c0_i32_8 = arith.constant 0 : i32
    %9 = arith.cmpi eq, %arg2, %c0_i32_8 : i32
    %10 = arith.extui %9 : i1 to i32
    %c0_i32_9 = arith.constant 0 : i32
    %11 = arith.cmpi ne, %10, %c0_i32_9 : i32
    scf.if %11 {
      %c0_10 = arith.constant 0 : index
      %c0_11 = arith.constant 0 : index
      %12 = vector.load %arg7[%c0_10, %c0_11] : memref<128x96xf32, #tpu.memory_space<vmem>>, vector<128x96xf32>
      %c0_12 = arith.constant 0 : index
      %c0_13 = arith.constant 0 : index
      %13 = vector.load %arg5[%c0_12, %c0_13] : memref<1x96xf32, #tpu.memory_space<vmem>>, vector<1x96xf32>
      %14 = vector.broadcast %13 : vector<1x96xf32> to vector<128x96xf32>
      %15 = arith.addf %12, %14 : vector<128x96xf32>
      %c0_14 = arith.constant 0 : index
      %c0_15 = arith.constant 0 : index
      %16 = vector.load %arg6[%c0_14, %c0_15] : memref<128x96xf32, #tpu.memory_space<vmem>>, vector<128x96xf32>
      tpu.vector_store %arg6[%c0_14, %c0_15], %15 {strides = array<i32>} : memref<128x96xf32, #tpu.memory_space<vmem>>, vector<128x96xf32>,
    } else {
    }
    return
  }
  func.func @transform_0(%arg0: i32, %arg1: i32, %arg2: i32) -> (i32, i32) {
    %c0_i32 = arith.constant 0 : i32
    return %arg0, %arg2 : i32, i32
  }
  func.func @transform_1(%arg0: i32, %arg1: i32, %arg2: i32) -> (i32, i32) {
    %c0_i32 = arith.constant 0 : i32
    return %arg2, %arg1 : i32, i32
  }
  func.func @transform_2(%arg0: i32, %arg1: i32, %arg2: i32) -> (i32, i32) {
    %c0_i32 = arith.constant 0 : i32
    %c0_i32_0 = arith.constant 0 : i32
    return %c0_i32, %arg1 : i32, i32
  }
  func.func @transform_3(%arg0: i32, %arg1: i32, %arg2: i32) -> (i32, i32) {
    %c0_i32 = arith.constant 0 : i32
    return %arg0, %arg1 : i32, i32
  }
}

</mosaic_0001>

<llo_original>
// kernel: tpu_custom_call.1
$region0: #{tpu_custom_call.1}
  #allocation0 [shape = 'u32[]', space=smem, size = 0x4, offset = 0x4, fixed_abs, tag = 'smem constant byte address 0x4 - core index']
  #allocation1 [shape = 'u32[72,128]{1,0:T(1,128)}', space=vmem, size = 0x9000, scoped, tag = 'internal scratch']
  #allocation2 [shape = 'f32[128,96]{1,0:T(8,128)}', space=vmem, size = 0x10000, scoped, tag = 'scratch operand']
  %s0 = inlined_call_operand.vmem [shape: f32[128,32], index: 0, kind: input, shape index: {}]
  %s1 = inlined_call_operand.vmem [shape: f32[32,96], index: 1, kind: input, shape index: {}]
  %s2 = inlined_call_operand.vmem [shape: f32[1,96], index: 2, kind: input, shape index: {}]
  %s3 = inlined_call_operand.vmem [shape: f32[128,96], index: 3, kind: output, shape index: {}]
  %s4 = sld [smem:[#allocation0]]
  $region30: #{tpu_custom_call.1} parent=0
    _
  %s6 = ssub.s32 1, %s4
  %s7 = scalar_select 0, %s6, %s4
  // Predicated region
  $region2: #{tpu_custom_call.1} parent=0 // pred_check
    _
  $region3: #{tpu_custom_call.1} parent=0 // pred_check_branch
    %9 = sbr.rel (0) target = $region5
  $region4: #{tpu_custom_call.1} parent=0 // pred_region
    _
  $region5: #{tpu_custom_call.1} parent=0 // pred_fallthru
    _
  // Predicated region
  $region6: #{tpu_custom_call.1} parent=0 // pred_check
    _
  $region7: #{tpu_custom_call.1} parent=0 // pred_check_branch
    %11 = sbr.rel (0) target = $region9
  $region8: #{tpu_custom_call.1} parent=0 // pred_region
    _
  $region9: #{tpu_custom_call.1} parent=0 // pred_fallthru
    _
  // Predicated region
  $region10: #{tpu_custom_call.1} parent=0 // pred_check
    _
  $region11: #{tpu_custom_call.1} parent=0 // pred_check_branch
    %13 = sbr.rel (0) target = $region13
  $region12: #{tpu_custom_call.1} parent=0 // pred_region
    _
  $region13: #{tpu_custom_call.1} parent=0 // pred_fallthru
    _
  %p14 = scmp.eq.s32.totalorder 0, 0
  // Predicated region
  $region14: #{tpu_custom_call.1} parent=0 // pred_check
    %p15 = pneg %p14
  $region15: #{tpu_custom_call.1} parent=0 // pred_check_branch
    %17 = sbr.rel (%p15) target = $region17
  $region16: #{tpu_custom_call.1} parent=0 // pred_region
    %vm18 = vcmask 785408
    %19 = vst.msk [vmem:[#allocation2] sm:$0xff] %vm18, 0.0
    %20 = vst.msk [vmem:[#allocation2 + $0x8] sm:$0xff] %vm18, 0.0
    %21 = vst.msk [vmem:[#allocation2 + $0x10] sm:$0xff] %vm18, 0.0
    %22 = vst.msk [vmem:[#allocation2 + $0x18] sm:$0xff] %vm18, 0.0
    %23 = vst.msk [vmem:[#allocation2 + $0x20] sm:$0xff] %vm18, 0.0
    %24 = vst.msk [vmem:[#allocation2 + $0x28] sm:$0xff] %vm18, 0.0
    %25 = vst.msk [vmem:[#allocation2 + $0x30] sm:$0xff] %vm18, 0.0
    %26 = vst.msk [vmem:[#allocation2 + $0x38] sm:$0xff] %vm18, 0.0
    %27 = vst.msk [vmem:[#allocation2 + $0x40] sm:$0xff] %vm18, 0.0
    %28 = vst.msk [vmem:[#allocation2 + $0x48] sm:$0xff] %vm18, 0.0
    %29 = vst.msk [vmem:[#allocation2 + $0x50] sm:$0xff] %vm18, 0.0
    %30 = vst.msk [vmem:[#allocation2 + $0x58] sm:$0xff] %vm18, 0.0
    %31 = vst.msk [vmem:[#allocation2 + $0x60] sm:$0xff] %vm18, 0.0
    %32 = vst.msk [vmem:[#allocation2 + $0x68] sm:$0xff] %vm18, 0.0
    %33 = vst.msk [vmem:[#allocation2 + $0x70] sm:$0xff] %vm18, 0.0
    %34 = vst.msk [vmem:[#allocation2 + $0x78] sm:$0xff] %vm18, 0.0
  $region17: #{tpu_custom_call.1} parent=0 // pred_fallthru
    _
  %v35 = vld [vmem:[#allocation2] sm:$0xff]
  %v36 = vld [vmem:[#allocation2 + $0x8] sm:$0xff]
  %v37 = vld [vmem:[#allocation2 + $0x10] sm:$0xff]
  %v38 = vld [vmem:[#allocation2 + $0x18] sm:$0xff]
  %v39 = vld [vmem:[#allocation2 + $0x20] sm:$0xff]
  %v40 = vld [vmem:[#allocation2 + $0x28] sm:$0xff]
  %v41 = vld [vmem:[#allocation2 + $0x30] sm:$0xff]
  %v42 = vld [vmem:[#allocation2 + $0x38] sm:$0xff]
  %v43 = vld [vmem:[#allocation2 + $0x40] sm:$0xff]
  %v44 = vld [vmem:[#allocation2 + $0x48] sm:$0xff]
  %v45 = vld [vmem:[#allocation2 + $0x50] sm:$0xff]
  %v46 = vld [vmem:[#allocation2 + $0x58] sm:$0xff]
  %v47 = vld [vmem:[#allocation2 + $0x60] sm:$0xff]
  %v48 = vld [vmem:[#allocation2 + $0x68] sm:$0xff]
  %v49 = vld [vmem:[#allocation2 + $0x70] sm:$0xff]
  %v50 = vld [vmem:[#allocation2 + $0x78] sm:$0xff]
  %v51 = vld [vmem:[%s0] sm:$0xff]
  %v52 = vld [vmem:[%s0 + $0x8] sm:$0xff]
  %v53 = vld [vmem:[%s0 + $0x10] sm:$0xff]
  %v54 = vld [vmem:[%s0 + $0x18] sm:$0xff]
  %v55 = vld [vmem:[%s0 + $0x20] sm:$0xff]
  %v56 = vld [vmem:[%s0 + $0x28] sm:$0xff]
  %v57 = vld [vmem:[%s0 + $0x30] sm:$0xff]
  %v58 = vld [vmem:[%s0 + $0x38] sm:$0xff]
  %v59 = vld [vmem:[%s0 + $0x40] sm:$0xff]
  %v60 = vld [vmem:[%s0 + $0x48] sm:$0xff]
  %v61 = vld [vmem:[%s0 + $0x50] sm:$0xff]
  %v62 = vld [vmem:[%s0 + $0x58] sm:$0xff]
  %v63 = vld [vmem:[%s0 + $0x60] sm:$0xff]
  %v64 = vld [vmem:[%s0 + $0x68] sm:$0xff]
  %v65 = vld [vmem:[%s0 + $0x70] sm:$0xff]
  %v66 = vld [vmem:[%s0 + $0x78] sm:$0xff]
  %v67 = vld [vmem:[%s1] sm:$0xff]
  %v68 = vld [vmem:[%s1 + $0x8] sm:$0xff]
  %v69 = vld [vmem:[%s1 + $0x10] sm:$0xff]
  %v70 = vld [vmem:[%s1 + $0x18] sm:$0xff]
  %vm71 = vcmask 261120
  %v73 = vsel %vm71, %v51, 0
  %v76 = vsel %vm71, %v52, 0
  %v79 = vsel %vm71, %v53, 0
  %v82 = vsel %vm71, %v54, 0
  %v85 = vsel %vm71, %v55, 0
  %v88 = vsel %vm71, %v56, 0
  %v91 = vsel %vm71, %v57, 0
  %v94 = vsel %vm71, %v58, 0
  %v97 = vsel %vm71, %v59, 0
  %v100 = vsel %vm71, %v60, 0
  %v103 = vsel %vm71, %v61, 0
  %v106 = vsel %vm71, %v62, 0
  %v109 = vsel %vm71, %v63, 0
  %v112 = vsel %vm71, %v64, 0
  %v115 = vsel %vm71, %v65, 0
  %v118 = vsel %vm71, %v66, 0
  %120 = vmatpush.msra.mxu0 0.0
  %121 = vmatpush.msra.mxu0 0.0
  %122 = vmatpush.msra.mxu0 0.0
  %123 = vmatpush.msra.mxu0 0.0
  %124 = vmatpush.msra.mxu0 0.0
  %125 = vmatpush.msra.mxu0 0.0
  %126 = vmatpush.msra.mxu0 0.0
  %127 = vmatpush.msra.mxu0 0.0
  %128 = vmatpush.msra.mxu0 0.0
  %129 = vmatpush.msra.mxu0 0.0
  %130 = vmatpush.msra.mxu0 0.0
  %131 = vmatpush.msra.mxu0 0.0
  %132 = vmatpush.msra.mxu0 %v70
  %133 = vmatpush.msra.mxu0 %v69
  %134 = vmatpush.msra.mxu0 %v68
  %135 = vmatpush.msra.mxu0 %v67
  %136 = vmatmul.f32.gmra.mxu0 %v73
  %v137 = vpop.f32.mrf.mxu0
  %v138 = vadd.f32 0.0, %v137
  %139 = vmatmul.f32.gmra.mxu0 %v76
  %v140 = vpop.f32.mrf.mxu0
  %v141 = vadd.f32 0.0, %v140
  %142 = vmatmul.f32.gmra.mxu0 %v79
  %v143 = vpop.f32.mrf.mxu0
  %v144 = vadd.f32 0.0, %v143
  %145 = vmatmul.f32.gmra.mxu0 %v82
  %v146 = vpop.f32.mrf.mxu0
  %v147 = vadd.f32 0.0, %v146
  %148 = vmatmul.f32.gmra.mxu0 %v85
  %v149 = vpop.f32.mrf.mxu0
  %v150 = vadd.f32 0.0, %v149
  %151 = vmatmul.f32.gmra.mxu0 %v88
  %v152 = vpop.f32.mrf.mxu0
  %v153 = vadd.f32 0.0, %v152
  %154 = vmatmul.f32.gmra.mxu0 %v91
  %v155 = vpop.f32.mrf.mxu0
  %v156 = vadd.f32 0.0, %v155
  %157 = vmatmul.f32.gmra.mxu0 %v94
  %v158 = vpop.f32.mrf.mxu0
  %v159 = vadd.f32 0.0, %v158
  %160 = vmatmul.f32.gmra.mxu0 %v97
  %v161 = vpop.f32.mrf.mxu0
  %v162 = vadd.f32 0.0, %v161
  %163 = vmatmul.f32.gmra.mxu0 %v100
  %v164 = vpop.f32.mrf.mxu0
  %v165 = vadd.f32 0.0, %v164
  %166 = vmatmul.f32.gmra.mxu0 %v103
  %v167 = vpop.f32.mrf.mxu0
  %v168 = vadd.f32 0.0, %v167
  %169 = vmatmul.f32.gmra.mxu0 %v106
  %v170 = vpop.f32.mrf.mxu0
  %v171 = vadd.f32 0.0, %v170
  %172 = vmatmul.f32.gmra.mxu0 %v109
  %v173 = vpop.f32.mrf.mxu0
  %v174 = vadd.f32 0.0, %v173
  %175 = vmatmul.f32.gmra.mxu0 %v112
  %v176 = vpop.f32.mrf.mxu0
  %v177 = vadd.f32 0.0, %v176
  %178 = vmatmul.f32.gmra.mxu0 %v115
  %v179 = vpop.f32.mrf.mxu0
  %v180 = vadd.f32 0.0, %v179
  %181 = vmatmul.f32.gmra.mxu0 %v118
  %v182 = vpop.f32.mrf.mxu0
  %v183 = vadd.f32 0.0, %v182
  %184 = vdwg.mxu0
  %v185 = vadd.f32 %v35, %v138
  %v186 = vadd.f32 %v36, %v141
  %v187 = vadd.f32 %v37, %v144
  %v188 = vadd.f32 %v38, %v147
  %v189 = vadd.f32 %v39, %v150
  %v190 = vadd.f32 %v40, %v153
  %v191 = vadd.f32 %v41, %v156
  %v192 = vadd.f32 %v42, %v159
  %v193 = vadd.f32 %v43, %v162
  %v194 = vadd.f32 %v44, %v165
  %v195 = vadd.f32 %v45, %v168
  %v196 = vadd.f32 %v46, %v171
  %v197 = vadd.f32 %v47, %v174
  %v198 = vadd.f32 %v48, %v177
  %v199 = vadd.f32 %v49, %v180
  %v200 = vadd.f32 %v50, %v183
  %vm201 = vcmask 785408
  %202 = vst.msk [vmem:[#allocation2] sm:$0xff] %vm201, %v185
  %203 = vst.msk [vmem:[#allocation2 + $0x8] sm:$0xff] %vm201, %v186
  %204 = vst.msk [vmem:[#allocation2 + $0x10] sm:$0xff] %vm201, %v187
  %205 = vst.msk [vmem:[#allocation2 + $0x18] sm:$0xff] %vm201, %v188
  %206 = vst.msk [vmem:[#allocation2 + $0x20] sm:$0xff] %vm201, %v189
  %207 = vst.msk [vmem:[#allocation2 + $0x28] sm:$0xff] %vm201, %v190
  %208 = vst.msk [vmem:[#allocation2 + $0x30] sm:$0xff] %vm201, %v191
  %209 = vst.msk [vmem:[#allocation2 + $0x38] sm:$0xff] %vm201, %v192
  %210 = vst.msk [vmem:[#allocation2 + $0x40] sm:$0xff] %vm201, %v193
  %211 = vst.msk [vmem:[#allocation2 + $0x48] sm:$0xff] %vm201, %v194
  %212 = vst.msk [vmem:[#allocation2 + $0x50] sm:$0xff] %vm201, %v195
  %213 = vst.msk [vmem:[#allocation2 + $0x58] sm:$0xff] %vm201, %v196
  %214 = vst.msk [vmem:[#allocation2 + $0x60] sm:$0xff] %vm201, %v197
  %215 = vst.msk [vmem:[#allocation2 + $0x68] sm:$0xff] %vm201, %v198
  %216 = vst.msk [vmem:[#allocation2 + $0x70] sm:$0xff] %vm201, %v199
  %217 = vst.msk [vmem:[#allocation2 + $0x78] sm:$0xff] %vm201, %v200
  // Predicated region
  $region18: #{tpu_custom_call.1} parent=0 // pred_check
    %p218 = pneg %p14
  $region19: #{tpu_custom_call.1} parent=0 // pred_check_branch
    %220 = sbr.rel (%p218) target = $region21
  $region20: #{tpu_custom_call.1} parent=0 // pred_region
    %v221 = vld [vmem:[#allocation2] sm:$0xff]
    %v222 = vld [vmem:[#allocation2 + $0x8] sm:$0xff]
    %v223 = vld [vmem:[#allocation2 + $0x10] sm:$0xff]
    %v224 = vld [vmem:[#allocation2 + $0x18] sm:$0xff]
    %v225 = vld [vmem:[#allocation2 + $0x20] sm:$0xff]
    %v226 = vld [vmem:[#allocation2 + $0x28] sm:$0xff]
    %v227 = vld [vmem:[#allocation2 + $0x30] sm:$0xff]
    %v228 = vld [vmem:[#allocation2 + $0x38] sm:$0xff]
    %v229 = vld [vmem:[#allocation2 + $0x40] sm:$0xff]
    %v230 = vld [vmem:[#allocation2 + $0x48] sm:$0xff]
    %v231 = vld [vmem:[#allocation2 + $0x50] sm:$0xff]
    %v232 = vld [vmem:[#allocation2 + $0x58] sm:$0xff]
    %v233 = vld [vmem:[#allocation2 + $0x60] sm:$0xff]
    %v234 = vld [vmem:[#allocation2 + $0x68] sm:$0xff]
    %v235 = vld [vmem:[#allocation2 + $0x70] sm:$0xff]
    %v236 = vld [vmem:[#allocation2 + $0x78] sm:$0xff]
    %v237 = vld [vmem:[%s2] sm:$0x1]
    %v239 = vperm.slane %v237, 0
    %v241 = vadd.f32 %v221, %v239
    %v242 = vadd.f32 %v222, %v239
    %v243 = vadd.f32 %v223, %v239
    %v244 = vadd.f32 %v224, %v239
    %v245 = vadd.f32 %v225, %v239
    %v246 = vadd.f32 %v226, %v239
    %v247 = vadd.f32 %v227, %v239
    %v248 = vadd.f32 %v228, %v239
    %v249 = vadd.f32 %v229, %v239
    %v250 = vadd.f32 %v230, %v239
    %v251 = vadd.f32 %v231, %v239
    %v252 = vadd.f32 %v232, %v239
    %v253 = vadd.f32 %v233, %v239
    %v254 = vadd.f32 %v234, %v239
    %v255 = vadd.f32 %v235, %v239
    %v256 = vadd.f32 %v236, %v239
    %257 = vst.msk [vmem:[%s3] sm:$0xff] %vm201, %v241
    %258 = vst.msk [vmem:[%s3 + $0x8] sm:$0xff] %vm201, %v242
    %259 = vst.msk [vmem:[%s3 + $0x10] sm:$0xff] %vm201, %v243
    %260 = vst.msk [vmem:[%s3 + $0x18] sm:$0xff] %vm201, %v244
    %261 = vst.msk [vmem:[%s3 + $0x20] sm:$0xff] %vm201, %v245
    %262 = vst.msk [vmem:[%s3 + $0x28] sm:$0xff] %vm201, %v246
    %263 = vst.msk [vmem:[%s3 + $0x30] sm:$0xff] %vm201, %v247
    %264 = vst.msk [vmem:[%s3 + $0x38] sm:$0xff] %vm201, %v248
    %265 = vst.msk [vmem:[%s3 + $0x40] sm:$0xff] %vm201, %v249
    %266 = vst.msk [vmem:[%s3 + $0x48] sm:$0xff] %vm201, %v250
    %267 = vst.msk [vmem:[%s3 + $0x50] sm:$0xff] %vm201, %v251
    %268 = vst.msk [vmem:[%s3 + $0x58] sm:$0xff] %vm201, %v252
    %269 = vst.msk [vmem:[%s3 + $0x60] sm:$0xff] %vm201, %v253
    %270 = vst.msk [vmem:[%s3 + $0x68] sm:$0xff] %vm201, %v254
    %271 = vst.msk [vmem:[%s3 + $0x70] sm:$0xff] %vm201, %v255
    %272 = vst.msk [vmem:[%s3 + $0x78] sm:$0xff] %vm201, %v256
  $region21: #{tpu_custom_call.1} parent=0 // pred_fallthru
    _
  // Predicated region
  $region22: #{tpu_custom_call.1} parent=0 // pred_check
    _
  $region23: #{tpu_custom_call.1} parent=0 // pred_check_branch
    %274 = sbr.rel (0) target = $region25
  $region24: #{tpu_custom_call.1} parent=0 // pred_region
    _
  $region25: #{tpu_custom_call.1} parent=0 // pred_fallthru
    _
  // Predicated region
  $region26: #{tpu_custom_call.1} parent=0 // pred_check
    _
  $region27: #{tpu_custom_call.1} parent=0 // pred_check_branch
    %276 = sbr.rel (0) target = $region29
  $region28: #{tpu_custom_call.1} parent=0 // pred_region
    _
  $region29: #{tpu_custom_call.1} parent=0 // pred_fallthru
    _

</llo_original>
